<compile_context>
chip_gen: v7x
topology: tpu7x:2x2x1
jax: 0.10.0
libtpu: 0.0.40
codegen_flags: <defaults>
</compile_context>

<pallas_src>
import jax
import jax.numpy as jnp
from jax.experimental import pallas as pl
from jax.experimental.pallas import tpu as pltpu

LANE = 128


def _round_up(x, m):
    return ((x + m - 1) // m) * m


def gauss_monom_kernel(params_ref, x_ref, y_ref, o_ref):
    # params_ref: SMEM (6,) f32 = [mean_x, mean_y, cov00, cov01+cov10, cov11, const]
    # x_ref, y_ref: (TILE_R, 128) coordinate slabs
    # o_ref:        (TILE_R, 128)
    mx = params_ref[0]
    my = params_ref[1]
    a = params_ref[2]
    bc = params_ref[3]
    d = params_ref[4]
    c0 = params_ref[5]

    px = x_ref[...] - mx
    py = y_ref[...] - my
    # (t - mean)^T @ cov @ (t - mean), expanded for the 2x2 cov (VPU only).
    zeta = a * px * px + bc * px * py + d * py * py
    o_ref[...] = c0 * jnp.exp(-zeta)


def gauss_monom(points, mean, cov, const, *, tile_rows=512):
    """points: (N, 2) f32; mean: (2,); cov: (2, 2); const: scalar -> (N,) f32."""
    N, D = points.shape
    assert D == 2, "Gaussian2D operates on 2-D points"

    # Lane-dense tiling: N points -> (rows_padded, 128) coordinate slabs.
    rows = pl.cdiv(N, LANE)
    tile_rows = max(8, (tile_rows // 8) * 8)          # keep a multiple of 8 sublanes
    tr = min(tile_rows, _round_up(rows, 8))           # clamp for tiny inputs
    rows_p = _round_up(rows, tr)                      # whole number of tiles
    n_pad = rows_p * LANE

    pts = points.astype(jnp.float32)
    x = jnp.pad(pts[:, 0], (0, n_pad - N)).reshape(rows_p, LANE)
    y = jnp.pad(pts[:, 1], (0, n_pad - N)).reshape(rows_p, LANE)

    mean = jnp.asarray(mean, jnp.float32)
    cov = jnp.asarray(cov, jnp.float32)
    params = jnp.stack([
        mean[0], mean[1],
        cov[0, 0], cov[0, 1] + cov[1, 0], cov[1, 1],
        jnp.asarray(const, jnp.float32).reshape(()),
    ]).astype(jnp.float32)

    out = pl.pallas_call(
        gauss_monom_kernel,
        out_shape=jax.ShapeDtypeStruct((rows_p, LANE), jnp.float32),
        grid_spec=pltpu.PrefetchScalarGridSpec(
            num_scalar_prefetch=0,
            grid=(rows_p // tr,),
            in_specs=[
                # Scalar parameters live in SMEM (no per-step VMEM DMA).
                pl.BlockSpec(memory_space=pltpu.MemorySpace.SMEM),
                pl.BlockSpec((tr, LANE), lambda i: (i, 0)),   # x slab tile
                pl.BlockSpec((tr, LANE), lambda i: (i, 0)),   # y slab tile
            ],
            out_specs=pl.BlockSpec((tr, LANE), lambda i: (i, 0)),
        ),
        compiler_params=pltpu.CompilerParams(
            dimension_semantics=("parallel",)),
    )(params, x, y)

    return out.reshape(n_pad)[:N]  # drop padding -> (N,), matches torch.cat


def gauss_monom_ref(points, mean, cov, const):
    p = points - mean[None, :]
    zeta = jnp.einsum("ni,ij,nj->n", p, cov, p)
    return const * jnp.exp(-zeta)


if __name__ == "__main__":
    key = jax.random.PRNGKey(0)
    k1, k2 = jax.random.split(key)

    # Deterministic Gaussian2D parameters (params['mean'], ['cov'], ['const']).
    mean = jnp.array([0.5, -0.25], dtype=jnp.float32)
    cov = jnp.array([[1.0, 0.3],
                     [0.3, 2.0]], dtype=jnp.float32)
    const = jnp.float32(0.75)

    # Check 1: N not a multiple of 128 -> exercises padding, single tile.
    N1 = 1000
    pts1 = jax.random.normal(k1, (N1, 2), dtype=jnp.float32)
    out1 = jax.block_until_ready(gauss_monom(pts1, mean, cov, const))
    ref1 = gauss_monom_ref(pts1, mean, cov, const)
    assert out1.shape == (N1,)
    assert jnp.allclose(out1, ref1, atol=1e-5, rtol=1e-5)

    # Check 2: larger N with a multi-step grid.
    N2 = 70000
    pts2 = jax.random.normal(k2, (N2, 2), dtype=jnp.float32)
    out2 = jax.block_until_ready(
        gauss_monom(pts2, mean, cov, const, tile_rows=64))
    ref2 = gauss_monom_ref(pts2, mean, cov, const)
    assert out2.shape == (N2,)
    assert jnp.allclose(out2, ref2, atol=1e-5, rtol=1e-5)

    print("KERNEL_OK")
</pallas_src>

<mosaic_0001>
module attributes {stable_mosaic.version = 11 : i64} {
  func.func @gauss_monom_kernel(%arg0: i32, %arg1: memref<6xf32, #tpu.memory_space<smem>>, %arg2: memref<8x128xf32, #tpu.memory_space<vmem>>, %arg3: memref<8x128xf32, #tpu.memory_space<vmem>>, %arg4: memref<8x128xf32, #tpu.memory_space<vmem>>) attributes {dimension_semantics = [#tpu.dimension_semantics<parallel>], iteration_bounds = array<i64: 1>, scalar_prefetch = 0 : i64, scratch_operands = 0 : i64, tpu.core_type = #tpu.core_type<tc>, window_params = [{transform_indices = @transform_0, window_bounds = array<i64: 6>}, {transform_indices = @transform_1, window_bounds = array<i64: 8, 128>}, {transform_indices = @transform_2, window_bounds = array<i64: 8, 128>}, {transform_indices = @transform_3, window_bounds = array<i64: 8, 128>}]} {
    %c0 = arith.constant 0 : index
    %0 = memref.load %arg1[%c0] : memref<6xf32, #tpu.memory_space<smem>>
    %c1 = arith.constant 1 : index
    %1 = memref.load %arg1[%c1] : memref<6xf32, #tpu.memory_space<smem>>
    %c2 = arith.constant 2 : index
    %2 = memref.load %arg1[%c2] : memref<6xf32, #tpu.memory_space<smem>>
    %c3 = arith.constant 3 : index
    %3 = memref.load %arg1[%c3] : memref<6xf32, #tpu.memory_space<smem>>
    %c4 = arith.constant 4 : index
    %4 = memref.load %arg1[%c4] : memref<6xf32, #tpu.memory_space<smem>>
    %c5 = arith.constant 5 : index
    %5 = memref.load %arg1[%c5] : memref<6xf32, #tpu.memory_space<smem>>
    %c0_0 = arith.constant 0 : index
    %c0_1 = arith.constant 0 : index
    %6 = vector.load %arg2[%c0_0, %c0_1] : memref<8x128xf32, #tpu.memory_space<vmem>>, vector<8x128xf32>
    %7 = vector.broadcast %0 : f32 to vector<8x128xf32>
    %8 = arith.subf %6, %7 : vector<8x128xf32>
    %c0_2 = arith.constant 0 : index
    %c0_3 = arith.constant 0 : index
    %9 = vector.load %arg3[%c0_2, %c0_3] : memref<8x128xf32, #tpu.memory_space<vmem>>, vector<8x128xf32>
    %10 = vector.broadcast %1 : f32 to vector<8x128xf32>
    %11 = arith.subf %9, %10 : vector<8x128xf32>
    %12 = vector.broadcast %2 : f32 to vector<8x128xf32>
    %13 = arith.mulf %12, %8 : vector<8x128xf32>
    %14 = arith.mulf %13, %8 : vector<8x128xf32>
    %15 = vector.broadcast %3 : f32 to vector<8x128xf32>
    %16 = arith.mulf %15, %8 : vector<8x128xf32>
    %17 = arith.mulf %16, %11 : vector<8x128xf32>
    %18 = arith.addf %14, %17 : vector<8x128xf32>
    %19 = vector.broadcast %4 : f32 to vector<8x128xf32>
    %20 = arith.mulf %19, %11 : vector<8x128xf32>
    %21 = arith.mulf %20, %11 : vector<8x128xf32>
    %22 = arith.addf %18, %21 : vector<8x128xf32>
    %cst = arith.constant 0.000000e+00 : f32
    %23 = vector.broadcast %cst : f32 to vector<8x128xf32>
    %24 = arith.subf %23, %22 : vector<8x128xf32>
    %25 = math.exp %24 : vector<8x128xf32>
    %26 = vector.broadcast %5 : f32 to vector<8x128xf32>
    %27 = arith.mulf %26, %25 : vector<8x128xf32>
    %c0_4 = arith.constant 0 : index
    %c0_5 = arith.constant 0 : index
    %28 = vector.load %arg4[%c0_4, %c0_5] : memref<8x128xf32, #tpu.memory_space<vmem>>, vector<8x128xf32>
    tpu.vector_store %arg4[%c0_4, %c0_5], %27 {strides = array<i32>} : memref<8x128xf32, #tpu.memory_space<vmem>>, vector<8x128xf32>,
    return
  }
  func.func @transform_0(%arg0: i32) -> i32 {
    %c0_i32 = arith.constant 0 : i32
    %c0_i32_0 = arith.constant 0 : i32
    return %c0_i32 : i32
  }
  func.func @transform_1(%arg0: i32) -> (i32, i32) {
    %c0_i32 = arith.constant 0 : i32
    %c0_i32_0 = arith.constant 0 : i32
    return %arg0, %c0_i32 : i32, i32
  }
  func.func @transform_2(%arg0: i32) -> (i32, i32) {
    %c0_i32 = arith.constant 0 : i32
    %c0_i32_0 = arith.constant 0 : i32
    return %arg0, %c0_i32 : i32, i32
  }
  func.func @transform_3(%arg0: i32) -> (i32, i32) {
    %c0_i32 = arith.constant 0 : i32
    %c0_i32_0 = arith.constant 0 : i32
    return %arg0, %c0_i32 : i32, i32
  }
}

</mosaic_0001>

<llo_original>
// kernel: tpu_custom_call.1
$region0: #{tpu_custom_call.1}
  #allocation0 [shape = 'u32[]', space=smem, size = 0x4, offset = 0x4, fixed_abs, tag = 'smem constant byte address 0x4 - core index']
  #allocation1 [shape = 'u32[144,128]{1,0:T(1,128)}', space=vmem, size = 0x12000, scoped, tag = 'internal scratch']
  %s0 = inlined_call_operand.hbm [shape: f32[6], index: 0, kind: input, shape index: {}]
  %s1 = inlined_call_operand.hbm [shape: f32[8,128], index: 1, kind: input, shape index: {}]
  %s2 = inlined_call_operand.hbm [shape: f32[8,128], index: 2, kind: input, shape index: {}]
  %s3 = inlined_call_operand.hbm [shape: f32[8,128], index: 3, kind: output, shape index: {}]
  %s4 = sld [smem:[#allocation0]]
  $region34: #{tpu_custom_call.1} parent=0
    _
  %s6 = ssub.s32 1, %s4
  %s7 = scalar_select 0, %s6, %s4
  $region1: #{tpu_custom_call.1} parent=0
    #allocation2 [shape = 'u8[512]{0}', space=smem, size = 0x200, scoped, tag = 'input window, operand 0, single buffered']
    #allocation3 [shape = 's32[1]{0}', space=sflag, size = 0x4, scoped, tag = 'scoped memory for tpu_custom_call.1']
    #allocation4 [shape = 's32[1]{0}', space=sflag, size = 0x4, scoped, tag = 'scoped memory for tpu_custom_call.1']
    #allocation5 [shape = 's32[1]{0}', space=sflag, size = 0x4, scoped, tag = 'scoped memory for tpu_custom_call.1']
    #allocation6 [shape = 'u8[4096]{0}', space=vmem, size = 0x1000, scoped, tag = 'input window, operand 1, single buffered']
    #allocation7 [shape = 'u8[4096]{0}', space=vmem, size = 0x1000, scoped, tag = 'input window, operand 2, single buffered']
    #allocation8 [shape = 's32[1]{0}', space=sflag, size = 0x4, scoped, tag = 'scoped memory for tpu_custom_call.1']
    #allocation9 [shape = 'u8[4096]{0}', space=vmem, size = 0x1000, scoped, tag = 'output window, operand 0, single buffered']
    %8 = vsyncpa [#allocation5], 0
    %9 = vsyncpa [#allocation3], 0
    %10 = vsyncpa [#allocation8], 0
    %11 = vsyncpa [#allocation4], 0
    // Predicated region
    $region2: #{tpu_custom_call.1} parent=1 // pred_check
      _
    $region3: #{tpu_custom_call.1} parent=1 // pred_check_branch
      %13 = sbr.rel (0) target = $region5
    $region4: #{tpu_custom_call.1} parent=1 // pred_region
      %s15 = ssub.s32 16, 16
      %16 = vsyncadd [#allocation5], %s15
      %19 = dma.hbm_to_smem %s0, 16, [#allocation2], [#allocation5]
    $region5: #{tpu_custom_call.1} parent=1 // pred_fallthru
      _
    // Predicated region
    $region6: #{tpu_custom_call.1} parent=1 // pred_check
      _
    $region7: #{tpu_custom_call.1} parent=1 // pred_check_branch
      %21 = sbr.rel (0) target = $region9
    $region8: #{tpu_custom_call.1} parent=1 // pred_region
      %s23 = ssub.s32 128, 128
      %24 = vsyncadd [#allocation3], %s23
      %s26 = sshll.u32 [#allocation6], 4
      %s27 = int_to_ptr.vmem [resolvable:$true] %s26
      %29 = dma.hbm_to_vmem [thread:$0]  %s1, 128, %s27, [#allocation3]
    $region9: #{tpu_custom_call.1} parent=1 // pred_fallthru
      _
    // Predicated region
    $region10: #{tpu_custom_call.1} parent=1 // pred_check
      _
    $region11: #{tpu_custom_call.1} parent=1 // pred_check_branch
      %31 = sbr.rel (0) target = $region13
    $region12: #{tpu_custom_call.1} parent=1 // pred_region
      %s33 = ssub.s32 128, 128
      %34 = vsyncadd [#allocation8], %s33
      %s36 = sshll.u32 [#allocation7], 4
      %s37 = int_to_ptr.vmem [resolvable:$true] %s36
      %39 = dma.hbm_to_vmem [thread:$0]  %s2, 128, %s37, [#allocation8]
    $region13: #{tpu_custom_call.1} parent=1 // pred_fallthru
      _
    // Predicated region
    $region14: #{tpu_custom_call.1} parent=1 // pred_check
      _
    $region15: #{tpu_custom_call.1} parent=1 // pred_check_branch
      %41 = sbr.rel (0) target = $region17
    $region16: #{tpu_custom_call.1} parent=1 // pred_region
      %42 = dma.done [#allocation5], 16
    $region17: #{tpu_custom_call.1} parent=1 // pred_fallthru
      _
    // Predicated region
    $region18: #{tpu_custom_call.1} parent=1 // pred_check
      _
    $region19: #{tpu_custom_call.1} parent=1 // pred_check_branch
      %44 = sbr.rel (0) target = $region21
    $region20: #{tpu_custom_call.1} parent=1 // pred_region
      %45 = dma.done [#allocation3], 128
    $region21: #{tpu_custom_call.1} parent=1 // pred_fallthru
      _
    // Predicated region
    $region22: #{tpu_custom_call.1} parent=1 // pred_check
      _
    $region23: #{tpu_custom_call.1} parent=1 // pred_check_branch
      %47 = sbr.rel (0) target = $region25
    $region24: #{tpu_custom_call.1} parent=1 // pred_region
      %48 = dma.done [#allocation8], 128
    $region25: #{tpu_custom_call.1} parent=1 // pred_fallthru
      _
    %49 = sfence
    %s50 = sld [smem:[#allocation2]]
    %s51 = sld [smem:[#allocation2 + $0x1]]
    %s52 = sld [smem:[#allocation2 + $0x2]]
    %s53 = sld [smem:[#allocation2 + $0x3]]
    %s54 = sld [smem:[#allocation2 + $0x4]]
    %s55 = sld [smem:[#allocation2 + $0x5]]
    %v56 = vld [vmem:[#allocation6] sm:$0xff]
    %v57 = vstv %s50
    %v58 = vsub.f32 %v56, %v57
    %v59 = vld [vmem:[#allocation7] sm:$0xff]
    %v60 = vstv %s51
    %v61 = vsub.f32 %v59, %v60
    %v62 = vstv %s52
    %v63 = vmul.f32 %v62, %v58
    %v64 = vmul.f32 %v63, %v58
    %v65 = vstv %s53
    %v66 = vmul.f32 %v65, %v58
    %v67 = vmul.f32 %v66, %v61
    %v68 = vadd.f32 %v64, %v67
    %v69 = vstv %s54
    %v70 = vmul.f32 %v69, %v61
    %v71 = vmul.f32 %v70, %v61
    %v72 = vadd.f32 %v68, %v71
    %v73 = vsub.f32 0.0, %v72
    %v74 = vmul.f32 %v73, 1.442695
    %v75 = vpow.pop %v74
    %v76 = vstv %s55
    %v77 = vmul.f32 %v76, %v75
    %78 = vst [vmem:[#allocation9] sm:$0xff] %v77
    // Predicated region
    $region26: #{tpu_custom_call.1} parent=1 // pred_check
      _
    $region27: #{tpu_custom_call.1} parent=1 // pred_check_branch
      %80 = sbr.rel (0) target = $region29
    $region28: #{tpu_custom_call.1} parent=1 // pred_region
      %s82 = ssub.s32 128, 128
      %83 = vsyncadd [#allocation4], %s82
      %s85 = sshll.u32 [#allocation9], 4
      %s86 = int_to_ptr.vmem [resolvable:$true] %s85
      %88 = dma.vmem_to_hbm [thread:$0]  %s86, 128, %s3, [#allocation4]
    $region29: #{tpu_custom_call.1} parent=1 // pred_fallthru
      _
    // Predicated region
    $region30: #{tpu_custom_call.1} parent=1 // pred_check
      _
    $region31: #{tpu_custom_call.1} parent=1 // pred_check_branch
      %90 = sbr.rel (0) target = $region33
    $region32: #{tpu_custom_call.1} parent=1 // pred_region
      %91 = dma.done [#allocation4], 128
    $region33: #{tpu_custom_call.1} parent=1 // pred_fallthru
      _
    %92 = vsyncpa [#allocation3], 1
    %93 = vsyncpa [#allocation8], 1
    %94 = vsyncpa [#allocation4], 1
    %95 = vsyncpa [#allocation5], 1

</llo_original>
